<compile_context>
chip_gen: v7x
topology: tpu7x:2x2x1
jax: 0.10.0
libtpu: 0.0.40
codegen_flags: <defaults>
</compile_context>

<pallas_src>
import jax
import jax.numpy as jnp
import numpy as np
from jax.experimental import pallas as pl
from jax.experimental.pallas import tpu as pltpu

HIDDEN1 = 512
HIDDEN2 = 256
LANE = 128
SUBLANE = 8


def _round_up(n, m):
    return ((n + m - 1) // m) * m


def _mlp_kernel(x_ref, w1_ref, t1_ref, w2_ref, t2_ref, w3_ref, b3_ref, o_ref):
    # Layer 1: x @ W1 (BN scale pre-folded into W1), + BN shift, ReLU.  Dropout = identity (eval).
    h1 = jnp.dot(x_ref[...], w1_ref[...], preferred_element_type=jnp.float32)
    h1 = jnp.maximum(h1 + t1_ref[...], 0.0)
    # Layer 2: same structure.
    h2 = jnp.dot(h1.astype(w2_ref.dtype), w2_ref[...], preferred_element_type=jnp.float32)
    h2 = jnp.maximum(h2 + t2_ref[...], 0.0)
    # Layer 3: logits (lane-padded to a multiple of 128 columns) = h2 @ W3 + b3
    o_ref[...] = (jnp.dot(h2.astype(w3_ref.dtype), w3_ref[...],
                          preferred_element_type=jnp.float32) + b3_ref[...])


def nonlinear_classifier_forward(x, params, num_classes, *, tb_max=128):
    """x: (B, input_dim) float32 -> logits (B, num_classes) float32."""
    w1, t1, w2, t2, w3, b3 = params
    B, input_dim = x.shape
    n_pad = w3.shape[1]  # lane-padded class dim

    # Batch tiling: tile must be a multiple of the 8-row sublane.
    TB = min(tb_max, _round_up(B, SUBLANE))
    B_pad = _round_up(B, TB)
    xb = x.astype(w1.dtype)
    if B_pad != B:
        xb = jnp.pad(xb, ((0, B_pad - B), (0, 0)))

    grid = (B_pad // TB,)

    flops = 2 * B_pad * (input_dim * HIDDEN1 + HIDDEN1 * HIDDEN2 + HIDDEN2 * n_pad)
    bytes_accessed = (xb.size * xb.dtype.itemsize
                      + sum(int(a.size) * a.dtype.itemsize for a in params)
                      + B_pad * n_pad * 4)

    out = pl.pallas_call(
        _mlp_kernel,
        out_shape=jax.ShapeDtypeStruct((B_pad, n_pad), jnp.float32),
        grid=grid,
        in_specs=[
            pl.BlockSpec((TB, input_dim), lambda i: (i, 0)),        # x: batch-tiled
            pl.BlockSpec((input_dim, HIDDEN1), lambda i: (0, 0)),   # weights: VMEM-resident
            pl.BlockSpec((1, HIDDEN1), lambda i: (0, 0)),
            pl.BlockSpec((HIDDEN1, HIDDEN2), lambda i: (0, 0)),
            pl.BlockSpec((1, HIDDEN2), lambda i: (0, 0)),
            pl.BlockSpec((HIDDEN2, n_pad), lambda i: (0, 0)),
            pl.BlockSpec((1, n_pad), lambda i: (0, 0)),
        ],
        out_specs=pl.BlockSpec((TB, n_pad), lambda i: (i, 0)),
        compiler_params=pltpu.CompilerParams(
            dimension_semantics=("parallel",),        # megacore sharding on v7x
            vmem_limit_bytes=32 * 1024 * 1024,        # fits v7x's 64 MiB VMEM with headroom
        ),
        cost_estimate=pl.CostEstimate(flops=flops, transcendentals=0,
                                      bytes_accessed=bytes_accessed),
    )(xb, w1, t1, w2, t2, w3, b3)

    return out[:B, :num_classes]


def init_params(key, input_dim, num_classes, eps=1e-5, weight_dtype=jnp.bfloat16):
    """Deterministic synthetic parameters matching the PyTorch module shapes.

    Returns kernel-ready params: BN scales folded into bf16 weights, BN shifts kept as
    f32 biases, final layer lane-padded to a multiple of 128 classes.
    """
    k1, k2, k3, k4, k5, k6, k7, k8 = jax.random.split(key, 8)

    def kaiming_uniform(k, fan_in, shape):
        bound = np.sqrt(6.0 / fan_in)
        return jax.random.uniform(k, shape, jnp.float32, -bound, bound)

    # Linear weights, stored (in, out) so forward is x @ W.
    w1 = kaiming_uniform(k1, input_dim, (input_dim, HIDDEN1))
    w2 = kaiming_uniform(k2, HIDDEN1, (HIDDEN1, HIDDEN2))
    w3 = kaiming_uniform(k3, HIDDEN2, (HIDDEN2, num_classes))

    # BatchNorm1d (inference) parameters; small random values so the fold is non-trivial.
    gamma1 = 1.0 + 0.1 * jax.random.normal(k4, (HIDDEN1,), jnp.float32)
    beta1 = 0.1 * jax.random.normal(k5, (HIDDEN1,), jnp.float32)
    mean1 = 0.05 * jax.random.normal(k6, (HIDDEN1,), jnp.float32)
    var1 = jnp.abs(1.0 + 0.1 * jax.random.normal(k7, (HIDDEN1,), jnp.float32))

    gamma2 = jnp.ones((HIDDEN2,), jnp.float32)
    beta2 = jnp.zeros((HIDDEN2,), jnp.float32)
    mean2 = 0.05 * jax.random.normal(k8, (HIDDEN2,), jnp.float32)
    var2 = jnp.ones((HIDDEN2,), jnp.float32)

    # Fold BN:  y = (x @ W) * s + t   ->   y = x @ (W * s) + t
    inv1 = gamma1 / jnp.sqrt(var1 + eps)
    inv2 = gamma2 / jnp.sqrt(var2 + eps)
    w1f = (w1 * inv1[None, :]).astype(weight_dtype)
    w2f = (w2 * inv2[None, :]).astype(weight_dtype)
    t1 = (beta1 - mean1 * inv1).reshape(1, HIDDEN1).astype(jnp.float32)
    t2 = (beta2 - mean2 * inv2).reshape(1, HIDDEN2).astype(jnp.float32)

    # Final layer: pad to a lane-dense output width (multiple of 128).
    n_pad = _round_up(num_classes, LANE)
    w3p = jnp.zeros((HIDDEN2, n_pad), jnp.float32).at[:, :num_classes].set(w3)
    w3p = w3p.astype(weight_dtype)
    b3p = jnp.zeros((1, n_pad), jnp.float32)  # linear3 bias init to 0.0

    return (w1f, t1, w2f, t2, w3p, b3p)


def reference_forward(x, params, num_classes):
    """Pure-JAX reference of the same (eval-mode) semantics, same dtypes as the kernel."""
    w1, t1, w2, t2, w3, b3 = params
    xb = x.astype(w1.dtype)
    h1 = jnp.maximum(jnp.dot(xb, w1, preferred_element_type=jnp.float32) + t1, 0.0)
    h2 = jnp.maximum(jnp.dot(h1.astype(w2.dtype), w2,
                             preferred_element_type=jnp.float32) + t2, 0.0)
    out = jnp.dot(h2.astype(w3.dtype), w3, preferred_element_type=jnp.float32) + b3
    return out[:, :num_classes]


if __name__ == "__main__":
    # TODO(synk): training-mode dropout / batch-statistic BatchNorm are not modeled;
    # this is the eval-mode forward (dropout = identity, BN folded into scale/shift).
    batch = 8
    input_dim = 64
    num_classes = 16

    key = jax.random.PRNGKey(0)
    kx, kp = jax.random.split(key)
    x = jax.random.normal(kx, (batch, input_dim), jnp.float32)
    params = init_params(kp, input_dim, num_classes)

    out = nonlinear_classifier_forward(x, params, num_classes)
    out = jax.block_until_ready(out)

    ref = reference_forward(x, params, num_classes)
    np.testing.assert_allclose(np.asarray(out), np.asarray(ref),
                               rtol=1e-3, atol=1e-3)
    assert out.shape == (batch, num_classes)
    print("KERNEL_OK")
</pallas_src>

<mosaic_0001>
module attributes {stable_mosaic.version = 11 : i64} {
  func.func @_mlp_kernel(%arg0: i32, %arg1: memref<8x64xbf16, #tpu.memory_space<vmem>>, %arg2: memref<64x512xbf16, #tpu.memory_space<vmem>>, %arg3: memref<1x512xf32, #tpu.memory_space<vmem>>, %arg4: memref<512x256xbf16, #tpu.memory_space<vmem>>, %arg5: memref<1x256xf32, #tpu.memory_space<vmem>>, %arg6: memref<256x128xbf16, #tpu.memory_space<vmem>>, %arg7: memref<1x128xf32, #tpu.memory_space<vmem>>, %arg8: memref<8x128xf32, #tpu.memory_space<vmem>>) attributes {dimension_semantics = [#tpu.dimension_semantics<parallel>], iteration_bounds = array<i64: 1>, scalar_prefetch = 0 : i64, scratch_operands = 0 : i64, tpu.core_type = #tpu.core_type<tc>, window_params = [{transform_indices = @transform_0, window_bounds = array<i64: 8, 64>}, {pipeline_mode = #tpu.pipeline_mode<synchronous>, transform_indices = @transform_1, window_bounds = array<i64: 64, 512>}, {pipeline_mode = #tpu.pipeline_mode<synchronous>, transform_indices = @transform_2, window_bounds = array<i64: 1, 512>}, {pipeline_mode = #tpu.pipeline_mode<synchronous>, transform_indices = @transform_3, window_bounds = array<i64: 512, 256>}, {pipeline_mode = #tpu.pipeline_mode<synchronous>, transform_indices = @transform_4, window_bounds = array<i64: 1, 256>}, {pipeline_mode = #tpu.pipeline_mode<synchronous>, transform_indices = @transform_5, window_bounds = array<i64: 256, 128>}, {pipeline_mode = #tpu.pipeline_mode<synchronous>, transform_indices = @transform_6, window_bounds = array<i64: 1, 128>}, {transform_indices = @transform_7, window_bounds = array<i64: 8, 128>}]} {
    %c0 = arith.constant 0 : index
    %c0_0 = arith.constant 0 : index
    %0 = vector.load %arg1[%c0, %c0_0] : memref<8x64xbf16, #tpu.memory_space<vmem>>, vector<8x64xbf16>
    %c0_1 = arith.constant 0 : index
    %c0_2 = arith.constant 0 : index
    %1 = vector.load %arg2[%c0_1, %c0_2] : memref<64x512xbf16, #tpu.memory_space<vmem>>, vector<64x512xbf16>
    %cst = arith.constant dense<0.000000e+00> : vector<8x512xf32>
    %2 = tpu.matmul %0, %1, %cst {dimension_numbers = #tpu.dot_dimension_numbers<[1], [0], [0], [1], [0, 0, 1, 1], [], []>} : vector<8x64xbf16>, vector<64x512xbf16>, vector<8x512xf32> -> vector<8x512xf32>
    %c0_3 = arith.constant 0 : index
    %c0_4 = arith.constant 0 : index
    %3 = vector.load %arg3[%c0_3, %c0_4] : memref<1x512xf32, #tpu.memory_space<vmem>>, vector<1x512xf32>
    %4 = vector.broadcast %3 : vector<1x512xf32> to vector<8x512xf32>
    %5 = arith.addf %2, %4 : vector<8x512xf32>
    %cst_5 = arith.constant 0.000000e+00 : f32
    %6 = vector.broadcast %cst_5 : f32 to vector<8x512xf32>
    %7 = arith.maximumf %5, %6 : vector<8x512xf32>
    %8 = arith.truncf %7 : vector<8x512xf32> to vector<8x512xbf16>
    %c0_6 = arith.constant 0 : index
    %c0_7 = arith.constant 0 : index
    %9 = vector.load %arg4[%c0_6, %c0_7] : memref<512x256xbf16, #tpu.memory_space<vmem>>, vector<512x256xbf16>
    %cst_8 = arith.constant dense<0.000000e+00> : vector<8x256xf32>
    %10 = tpu.matmul %8, %9, %cst_8 {dimension_numbers = #tpu.dot_dimension_numbers<[1], [0], [0], [1], [0, 0, 1, 1], [], []>} : vector<8x512xbf16>, vector<512x256xbf16>, vector<8x256xf32> -> vector<8x256xf32>
    %c0_9 = arith.constant 0 : index
    %c0_10 = arith.constant 0 : index
    %11 = vector.load %arg5[%c0_9, %c0_10] : memref<1x256xf32, #tpu.memory_space<vmem>>, vector<1x256xf32>
    %12 = vector.broadcast %11 : vector<1x256xf32> to vector<8x256xf32>
    %13 = arith.addf %10, %12 : vector<8x256xf32>
    %cst_11 = arith.constant 0.000000e+00 : f32
    %14 = vector.broadcast %cst_11 : f32 to vector<8x256xf32>
    %15 = arith.maximumf %13, %14 : vector<8x256xf32>
    %16 = arith.truncf %15 : vector<8x256xf32> to vector<8x256xbf16>
    %c0_12 = arith.constant 0 : index
    %c0_13 = arith.constant 0 : index
    %17 = vector.load %arg6[%c0_12, %c0_13] : memref<256x128xbf16, #tpu.memory_space<vmem>>, vector<256x128xbf16>
    %cst_14 = arith.constant dense<0.000000e+00> : vector<8x128xf32>
    %18 = tpu.matmul %16, %17, %cst_14 {dimension_numbers = #tpu.dot_dimension_numbers<[1], [0], [0], [1], [0, 0, 1, 1], [], []>} : vector<8x256xbf16>, vector<256x128xbf16>, vector<8x128xf32> -> vector<8x128xf32>
    %c0_15 = arith.constant 0 : index
    %c0_16 = arith.constant 0 : index
    %19 = vector.load %arg7[%c0_15, %c0_16] : memref<1x128xf32, #tpu.memory_space<vmem>>, vector<1x128xf32>
    %20 = vector.broadcast %19 : vector<1x128xf32> to vector<8x128xf32>
    %21 = arith.addf %18, %20 : vector<8x128xf32>
    %c0_17 = arith.constant 0 : index
    %c0_18 = arith.constant 0 : index
    %22 = vector.load %arg8[%c0_17, %c0_18] : memref<8x128xf32, #tpu.memory_space<vmem>>, vector<8x128xf32>
    tpu.vector_store %arg8[%c0_17, %c0_18], %21 {strides = array<i32>} : memref<8x128xf32, #tpu.memory_space<vmem>>, vector<8x128xf32>,
    return
  }
  func.func @transform_0(%arg0: i32) -> (i32, i32) {
    %c0_i32 = arith.constant 0 : i32
    %c0_i32_0 = arith.constant 0 : i32
    return %arg0, %c0_i32 : i32, i32
  }
  func.func @transform_1(%arg0: i32) -> (i32, i32) {
    %c0_i32 = arith.constant 0 : i32
    %c0_i32_0 = arith.constant 0 : i32
    %c0_i32_1 = arith.constant 0 : i32
    return %c0_i32, %c0_i32_0 : i32, i32
  }
  func.func @transform_2(%arg0: i32) -> (i32, i32) {
    %c0_i32 = arith.constant 0 : i32
    %c0_i32_0 = arith.constant 0 : i32
    %c0_i32_1 = arith.constant 0 : i32
    return %c0_i32, %c0_i32_0 : i32, i32
  }
  func.func @transform_3(%arg0: i32) -> (i32, i32) {
    %c0_i32 = arith.constant 0 : i32
    %c0_i32_0 = arith.constant 0 : i32
    %c0_i32_1 = arith.constant 0 : i32
    return %c0_i32, %c0_i32_0 : i32, i32
  }
  func.func @transform_4(%arg0: i32) -> (i32, i32) {
    %c0_i32 = arith.constant 0 : i32
    %c0_i32_0 = arith.constant 0 : i32
    %c0_i32_1 = arith.constant 0 : i32
    return %c0_i32, %c0_i32_0 : i32, i32
  }
  func.func @transform_5(%arg0: i32) -> (i32, i32) {
    %c0_i32 = arith.constant 0 : i32
    %c0_i32_0 = arith.constant 0 : i32
    %c0_i32_1 = arith.constant 0 : i32
    return %c0_i32, %c0_i32_0 : i32, i32
  }
  func.func @transform_6(%arg0: i32) -> (i32, i32) {
    %c0_i32 = arith.constant 0 : i32
    %c0_i32_0 = arith.constant 0 : i32
    %c0_i32_1 = arith.constant 0 : i32
    return %c0_i32, %c0_i32_0 : i32, i32
  }
  func.func @transform_7(%arg0: i32) -> (i32, i32) {
    %c0_i32 = arith.constant 0 : i32
    %c0_i32_0 = arith.constant 0 : i32
    return %arg0, %c0_i32 : i32, i32
  }
}

</mosaic_0001>

<llo_original>
// kernel: tpu_custom_call.1
$region0: #{tpu_custom_call.1}
  #allocation0 [shape = 'u32[]', space=smem, size = 0x4, offset = 0x4, fixed_abs, tag = 'smem constant byte address 0x4 - core index']
  #allocation1 [shape = 'u32[144,128]{1,0:T(1,128)}', space=vmem, size = 0x12000, scoped, tag = 'internal scratch']
  %s0 = inlined_call_operand.hbm [shape: bf16[8,64], index: 0, kind: input, shape index: {}]
  %s1 = inlined_call_operand.hbm [shape: bf16[64,512], index: 1, kind: input, shape index: {}]
  %s2 = inlined_call_operand.vmem [shape: f32[1,512], index: 2, kind: input, shape index: {}]
  %s3 = inlined_call_operand.hbm [shape: bf16[512,256], index: 3, kind: input, shape index: {}]
  %s4 = inlined_call_operand.vmem [shape: f32[1,256], index: 4, kind: input, shape index: {}]
  %s5 = inlined_call_operand.hbm [shape: bf16[256,128], index: 5, kind: input, shape index: {}]
  %s6 = inlined_call_operand.vmem [shape: f32[1,128], index: 6, kind: input, shape index: {}]
  %s7 = inlined_call_operand.hbm [shape: f32[8,128], index: 7, kind: output, shape index: {}]
  %s8 = sld [smem:[#allocation0]]
  $region54: #{tpu_custom_call.1} parent=0
    _
  %s10 = ssub.s32 1, %s8
  %s11 = scalar_select 0, %s10, %s8
  $region1: #{tpu_custom_call.1} parent=0
    #allocation2 [shape = 'u8[2048]{0}', space=vmem, size = 0x800, scoped, tag = 'input window, operand 0, single buffered']
    #allocation3 [shape = 's32[1]{0}', space=sflag, size = 0x4, scoped, tag = 'scoped memory for tpu_custom_call.1']
    #allocation4 [shape = 's32[1]{0}', space=sflag, size = 0x4, scoped, tag = 'scoped memory for tpu_custom_call.1']
    #allocation5 [shape = 'u8[65536]{0}', space=vmem, size = 0x10000, scoped, tag = 'input window, operand 1, single buffered']
    #allocation6 [shape = 's32[1]{0}', space=sflag, size = 0x4, scoped, tag = 'scoped memory for tpu_custom_call.1']
    #allocation7 [shape = 'u8[262144]{0}', space=vmem, size = 0x40000, scoped, tag = 'input window, operand 3, single buffered']
    #allocation8 [shape = 'u8[65536]{0}', space=vmem, size = 0x10000, scoped, tag = 'input window, operand 5, single buffered']
    #allocation9 [shape = 's32[1]{0}', space=sflag, size = 0x4, scoped, tag = 'scoped memory for tpu_custom_call.1']
    #allocation10 [shape = 'u8[4096]{0}', space=vmem, size = 0x1000, scoped, tag = 'output window, operand 0, single buffered']
    %12 = vsyncpa [#allocation3], 0
    %13 = vsyncpa [#allocation6], 0
    %14 = vsyncpa [#allocation9], 0
    %15 = vsyncpa [#allocation4], 0
    // Predicated region
    $region2: #{tpu_custom_call.1} parent=1 // pred_check
      _
    $region3: #{tpu_custom_call.1} parent=1 // pred_check_branch
      %17 = sbr.rel (0) target = $region5
    $region4: #{tpu_custom_call.1} parent=1 // pred_region
      %s19 = ssub.s32 64, 64
      %20 = vsyncadd [#allocation3], %s19
      %s22 = sshll.u32 [#allocation2], 4
      %s23 = int_to_ptr.vmem [resolvable:$true] %s22
      %25 = dma.hbm_to_vmem [thread:$0]  %s0, 64, %s23, [#allocation3]
    $region5: #{tpu_custom_call.1} parent=1 // pred_fallthru
      _
    // Predicated region
    $region6: #{tpu_custom_call.1} parent=1 // pred_check
      _
    $region7: #{tpu_custom_call.1} parent=1 // pred_check_branch
      %27 = sbr.rel (0) target = $region9
    $region8: #{tpu_custom_call.1} parent=1 // pred_region
      %s29 = ssub.s32 2048, 2048
      %30 = vsyncadd [#allocation6], %s29
      %s31 = sshll.u32 [#allocation5], 4
      %s32 = int_to_ptr.vmem [resolvable:$true] %s31
      %37 = dma.hbm_to_vmem [thread:$0]  %s1, 2048, %s32, [#allocation6], 256, 256, 16
    $region9: #{tpu_custom_call.1} parent=1 // pred_fallthru
      _
    // Predicated region
    $region10: #{tpu_custom_call.1} parent=1 // pred_check
      _
    $region11: #{tpu_custom_call.1} parent=1 // pred_check_branch
      %39 = sbr.rel (0) target = $region13
    $region12: #{tpu_custom_call.1} parent=1 // pred_region
      _
    $region13: #{tpu_custom_call.1} parent=1 // pred_fallthru
      _
    // Predicated region
    $region14: #{tpu_custom_call.1} parent=1 // pred_check
      _
    $region15: #{tpu_custom_call.1} parent=1 // pred_check_branch
      %41 = sbr.rel (0) target = $region17
    $region16: #{tpu_custom_call.1} parent=1 // pred_region
      %s43 = ssub.s32 8192, 8192
      %44 = vsyncadd [#allocation6], %s43
      %s45 = sshll.u32 [#allocation7], 4
      %s46 = int_to_ptr.vmem [resolvable:$true] %s45
      %51 = dma.hbm_to_vmem [thread:$0]  %s3, 8192, %s46, [#allocation6], 128, 128, 8
    $region17: #{tpu_custom_call.1} parent=1 // pred_fallthru
      _
    // Predicated region
    $region18: #{tpu_custom_call.1} parent=1 // pred_check
      _
    $region19: #{tpu_custom_call.1} parent=1 // pred_check_branch
      %53 = sbr.rel (0) target = $region21
    $region20: #{tpu_custom_call.1} parent=1 // pred_region
      _
    $region21: #{tpu_custom_call.1} parent=1 // pred_fallthru
      _
    // Predicated region
    $region22: #{tpu_custom_call.1} parent=1 // pred_check
      _
    $region23: #{tpu_custom_call.1} parent=1 // pred_check_branch
      %55 = sbr.rel (0) target = $region25
    $region24: #{tpu_custom_call.1} parent=1 // pred_region
      %s57 = ssub.s32 2048, 2048
      %58 = vsyncadd [#allocation9], %s57
      %s59 = sshll.u32 [#allocation8], 4
      %s60 = int_to_ptr.vmem [resolvable:$true] %s59
      %65 = dma.hbm_to_vmem [thread:$0]  %s5, 2048, %s60, [#allocation9], 64, 64, 4
    $region25: #{tpu_custom_call.1} parent=1 // pred_fallthru
      _
    // Predicated region
    $region26: #{tpu_custom_call.1} parent=1 // pred_check
      _
    $region27: #{tpu_custom_call.1} parent=1 // pred_check_branch
      %67 = sbr.rel (0) target = $region29
    $region28: #{tpu_custom_call.1} parent=1 // pred_region
      _
    $region29: #{tpu_custom_call.1} parent=1 // pred_fallthru
      _
    // Predicated region
    $region30: #{tpu_custom_call.1} parent=1 // pred_check
      _
    $region31: #{tpu_custom_call.1} parent=1 // pred_check_branch
      %69 = sbr.rel (0) target = $region33
    $region32: #{tpu_custom_call.1} parent=1 // pred_region
      %70 = dma.done [#allocation3], 64
    $region33: #{tpu_custom_call.1} parent=1 // pred_fallthru
      _
    // Predicated region
    $region34: #{tpu_custom_call.1} parent=1 // pred_check
      _
    $region35: #{tpu_custom_call.1} parent=1 // pred_check_branch
      %72 = sbr.rel (0) target = $region37
    $region36: #{tpu_custom_call.1} parent=1 // pred_region
      %73 = dma.done [#allocation6], 2048
    $region37: #{tpu_custom_call.1} parent=1 // pred_fallthru
      _
    // Predicated region
    $region38: #{tpu_custom_call.1} parent=1 // pred_check
      _
    $region39: #{tpu_custom_call.1} parent=1 // pred_check_branch
      %75 = sbr.rel (0) target = $region41
    $region40: #{tpu_custom_call.1} parent=1 // pred_region
      %76 = dma.done [#allocation6], 8192
    $region41: #{tpu_custom_call.1} parent=1 // pred_fallthru
      _
    // Predicated region
    $region42: #{tpu_custom_call.1} parent=1 // pred_check
      _
    $region43: #{tpu_custom_call.1} parent=1 // pred_check_branch
      %78 = sbr.rel (0) target = $region45
    $region44: #{tpu_custom_call.1} parent=1 // pred_region
      %79 = dma.done [#allocation9], 2048
    $region45: #{tpu_custom_call.1} parent=1 // pred_fallthru
      _
    %v81 = vld [vmem:[#allocation2] sm:$0xf]
    %v82 = vld [vmem:[#allocation5] sm:$0xff]
    %v83 = vld [vmem:[#allocation5 + $0x8] sm:$0xff]
    %v84 = vld [vmem:[#allocation5 + $0x10] sm:$0xff]
    %v85 = vld [vmem:[#allocation5 + $0x18] sm:$0xff]
    %v86 = vld [vmem:[#allocation5 + $0x20] sm:$0xff]
    %v87 = vld [vmem:[#allocation5 + $0x28] sm:$0xff]
    %v88 = vld [vmem:[#allocation5 + $0x30] sm:$0xff]
    %v89 = vld [vmem:[#allocation5 + $0x38] sm:$0xff]
    %v90 = vld [vmem:[#allocation5 + $0x40] sm:$0xff]
    %v91 = vld [vmem:[#allocation5 + $0x48] sm:$0xff]
    %v92 = vld [vmem:[#allocation5 + $0x50] sm:$0xff]
    %v93 = vld [vmem:[#allocation5 + $0x58] sm:$0xff]
    %v94 = vld [vmem:[#allocation5 + $0x60] sm:$0xff]
    %v95 = vld [vmem:[#allocation5 + $0x68] sm:$0xff]
    %v96 = vld [vmem:[#allocation5 + $0x70] sm:$0xff]
    %v97 = vld [vmem:[#allocation5 + $0x78] sm:$0xff]
    %v98 = vld [vmem:[%s2] sm:$0xf]
    %v100 = vlaneseq
    %v101 = vshrl.u32 %v100, 7
    %v102 = vsub.s32 0, %v101
    %v103 = vrot.slane %v98, %v102
    %v104 = vlaneseq
    %v105 = vshrl.u32 %v104, 7
    %v106 = vsub.s32 1, %v105
    %v107 = vrot.slane %v98, %v106
    %v108 = vlaneseq
    %v109 = vshrl.u32 %v108, 7
    %v110 = vsub.s32 2, %v109
    %v111 = vrot.slane %v98, %v110
    %v112 = vlaneseq
    %v113 = vshrl.u32 %v112, 7
    %v114 = vsub.s32 3, %v113
    %v115 = vrot.slane %v98, %v114
    %v136 = vunpack.c.l.b16 %v82
    %v137 = vunpack.c.h.b16 %v82
    %v138 = vunpack.c.l.b16 %v83
    %v139 = vunpack.c.h.b16 %v83
    %v140 = vunpack.c.l.b16 %v84
    %v141 = vunpack.c.h.b16 %v84
    %v142 = vunpack.c.l.b16 %v85
    %v143 = vunpack.c.h.b16 %v85
    %v144 = vunpack.c.l.b16 %v86
    %v145 = vunpack.c.h.b16 %v86
    %v146 = vunpack.c.l.b16 %v87
    %v147 = vunpack.c.h.b16 %v87
    %v148 = vunpack.c.l.b16 %v88
    %v149 = vunpack.c.h.b16 %v88
    %v150 = vunpack.c.l.b16 %v89
    %v151 = vunpack.c.h.b16 %v89
    %v152 = vunpack.c.l.b16 %v90
    %v153 = vunpack.c.h.b16 %v90
    %v154 = vunpack.c.l.b16 %v91
    %v155 = vunpack.c.h.b16 %v91
    %v156 = vunpack.c.l.b16 %v92
    %v157 = vunpack.c.h.b16 %v92
    %v158 = vunpack.c.l.b16 %v93
    %v159 = vunpack.c.h.b16 %v93
    %v160 = vunpack.c.l.b16 %v94
    %v161 = vunpack.c.h.b16 %v94
    %v162 = vunpack.c.l.b16 %v95
    %v163 = vunpack.c.h.b16 %v95
    %v164 = vunpack.c.l.b16 %v96
    %v165 = vunpack.c.h.b16 %v96
    %v166 = vunpack.c.l.b16 %v97
    %v167 = vunpack.c.h.b16 %v97
    %v168 = vpack.c.b16 %v140, %v136
    %v169 = vpack.c.b16 %v141, %v137
    %v170 = vpack.c.b16 %v142, %v138
    %v171 = vpack.c.b16 %v143, %v139
    %v172 = vpack.c.b16 %v148, %v144
    %v173 = vpack.c.b16 %v149, %v145
    %v174 = vpack.c.b16 %v150, %v146
    %v175 = vpack.c.b16 %v151, %v147
    %v176 = vpack.c.b16 %v156, %v152
    %v177 = vpack.c.b16 %v157, %v153
    %v178 = vpack.c.b16 %v158, %v154
    %v179 = vpack.c.b16 %v159, %v155
    %v180 = vpack.c.b16 %v164, %v160
    %v181 = vpack.c.b16 %v165, %v161
    %v182 = vpack.c.b16 %v166, %v162
    %v183 = vpack.c.b16 %v167, %v163
    %vm200 = vcmask 523264
    %v202 = vsel %vm200, %v81, 0
    %204 = vmatprep.subr.bf16.mxu0 %v169
    %205 = vmatpush1.bf16.msra.mxu0 %v168
    %206 = vmatprep.subr.bf16.mxu0 %v173
    %207 = vmatpush1.bf16.msra.mxu0 %v172
    %208 = vmatprep.subr.bf16.mxu0 %v177
    %209 = vmatpush1.bf16.msra.mxu0 %v176
    %210 = vmatprep.subr.bf16.mxu0 %v181
    %211 = vmatpush1.bf16.msra.mxu0 %v180
    %212 = vmatprep.subr.bf16.mxu0 0
    %213 = vmatpush1.bf16.msra.mxu0 0
    %214 = vmatprep.subr.bf16.mxu0 0
    %215 = vmatpush1.bf16.msra.mxu0 0
    %216 = vmatprep.subr.bf16.mxu0 0
    %217 = vmatpush1.bf16.msra.mxu0 0
    %218 = vmatprep.subr.bf16.mxu0 0
    %219 = vmatpush1.bf16.msra.mxu0 0
    %220 = vmatprep.subr.bf16.mxu0 0
    %221 = vmatpush1.bf16.msra.mxu0 0
    %222 = vmatprep.subr.bf16.mxu0 0
    %223 = vmatpush1.bf16.msra.mxu0 0
    %224 = vmatprep.subr.bf16.mxu0 0
    %225 = vmatpush1.bf16.msra.mxu0 0
    %226 = vmatprep.subr.bf16.mxu0 0
    %227 = vmatpush1.bf16.msra.mxu0 0
    %228 = vmatprep.subr.bf16.mxu0 0
    %229 = vmatpush1.bf16.msra.mxu0 0
    %230 = vmatprep.subr.bf16.mxu0 0
    %231 = vmatpush1.bf16.msra.mxu0 0
    %232 = vmatprep.subr.bf16.mxu0 0
    %233 = vmatpush1.bf16.msra.mxu0 0
    %234 = vmatprep.subr.bf16.mxu0 0
    %235 = vmatpush1.bf16.msra.mxu0 0
    %236 = vmatprep.mubr.bf16.mxu0 0
    %237 = vmatmul.mubr.bf16.gmra.mrb[0].mxu0 %v202
    %v238 = vpop.f32.mrb[0].mxu0
    %v239 = vadd.f32 %v103, %v238
    %v240 = vpop.f32.mrb[0].mxu0
    %v241 = vadd.f32 %v107, %v240
    %v242 = vpop.f32.mrb[0].mxu0
    %v243 = vpop.f32.mrb[0].mxu0
    %244 = vdwg.mxu0
    %245 = vmatprep.subr.bf16.mxu0 %v171
    %246 = vmatpush1.bf16.msra.mxu0 %v170
    %247 = vmatprep.subr.bf16.mxu0 %v175
    %248 = vmatpush1.bf16.msra.mxu0 %v174
    %249 = vmatprep.subr.bf16.mxu0 %v179
    %250 = vmatpush1.bf16.msra.mxu0 %v178
    %251 = vmatprep.subr.bf16.mxu0 %v183
    %252 = vmatpush1.bf16.msra.mxu0 %v182
    %253 = vmatprep.subr.bf16.mxu0 0
    %254 = vmatpush1.bf16.msra.mxu0 0
    %255 = vmatprep.subr.bf16.mxu0 0
    %256 = vmatpush1.bf16.msra.mxu0 0
    %257 = vmatprep.subr.bf16.mxu0 0
    %258 = vmatpush1.bf16.msra.mxu0 0
    %259 = vmatprep.subr.bf16.mxu0 0
    %260 = vmatpush1.bf16.msra.mxu0 0
    %261 = vmatprep.subr.bf16.mxu0 0
    %262 = vmatpush1.bf16.msra.mxu0 0
    %263 = vmatprep.subr.bf16.mxu0 0
    %264 = vmatpush1.bf16.msra.mxu0 0
    %265 = vmatprep.subr.bf16.mxu0 0
    %266 = vmatpush1.bf16.msra.mxu0 0
    %267 = vmatprep.subr.bf16.mxu0 0
    %268 = vmatpush1.bf16.msra.mxu0 0
    %269 = vmatprep.subr.bf16.mxu0 0
    %270 = vmatpush1.bf16.msra.mxu0 0
    %271 = vmatprep.subr.bf16.mxu0 0
    %272 = vmatpush1.bf16.msra.mxu0 0
    %273 = vmatprep.subr.bf16.mxu0 0
    %274 = vmatpush1.bf16.msra.mxu0 0
    %275 = vmatprep.subr.bf16.mxu0 0
    %276 = vmatpush1.bf16.msra.mxu0 0
    %277 = vmatprep.mubr.bf16.mxu0 0
    %278 = vmatmul.mubr.bf16.gmra.mrb[0].mxu0 %v202
    %v279 = vpop.f32.mrb[0].mxu0
    %v280 = vadd.f32 %v111, %v279
    %v281 = vpop.f32.mrb[0].mxu0
    %v282 = vadd.f32 %v115, %v281
    %v283 = vpop.f32.mrb[0].mxu0
    %v284 = vpop.f32.mrb[0].mxu0
    %285 = vdwg.mxu0
    %v286 = vmax.f32 %v239, 0.0
    %v287 = vmax.f32 %v241, 0.0
    %v288 = vmax.f32 %v280, 0.0
    %v289 = vmax.f32 %v282, 0.0
    %v290 = vpack.c.bf16 %v286, %v286
    %v291 = vpack.c.bf16 %v287, %v287
    %v292 = vpack.c.bf16 %v288, %v288
    %v293 = vpack.c.bf16 %v289, %v289
    %v294 = vld [vmem:[#allocation7] sm:$0xff]
    %v295 = vld [vmem:[#allocation7 + $0x8] sm:$0xff]
    %v296 = vld [vmem:[#allocation7 + $0x10] sm:$0xff]
    %v297 = vld [vmem:[#allocation7 + $0x18] sm:$0xff]
    %v298 = vld [vmem:[#allocation7 + $0x20] sm:$0xff]
    %v299 = vld [vmem:[#allocation7 + $0x28] sm:$0xff]
    %v300 = vld [vmem:[#allocation7 + $0x30] sm:$0xff]
    %v301 = vld [vmem:[#allocation7 + $0x38] sm:$0xff]
    %v302 = vld [vmem:[#allocation7 + $0x40] sm:$0xff]
    %v303 = vld [vmem:[#allocation7 + $0x48] sm:$0xff]
    %v304 = vld [vmem:[#allocation7 + $0x50] sm:$0xff]
    %v305 = vld [vmem:[#allocation7 + $0x58] sm:$0xff]
    %v306 = vld [vmem:[#allocation7 + $0x60] sm:$0xff]
    %v307 = vld [vmem:[#allocation7 + $0x68] sm:$0xff]
    %v308 = vld [vmem:[#allocation7 + $0x70] sm:$0xff]
    %v309 = vld [vmem:[#allocation7 + $0x78] sm:$0xff]
    %v310 = vld [vmem:[#allocation7 + $0x80] sm:$0xff]
    %v311 = vld [vmem:[#allocation7 + $0x88] sm:$0xff]
    %v312 = vld [vmem:[#allocation7 + $0x90] sm:$0xff]
    %v313 = vld [vmem:[#allocation7 + $0x98] sm:$0xff]
    %v314 = vld [vmem:[#allocation7 + $0xa0] sm:$0xff]
    %v315 = vld [vmem:[#allocation7 + $0xa8] sm:$0xff]
    %v316 = vld [vmem:[#allocation7 + $0xb0] sm:$0xff]
    %v317 = vld [vmem:[#allocation7 + $0xb8] sm:$0xff]
    %v318 = vld [vmem:[#allocation7 + $0xc0] sm:$0xff]
    %v319 = vld [vmem:[#allocation7 + $0xc8] sm:$0xff]
    %v320 = vld [vmem:[#allocation7 + $0xd0] sm:$0xff]
    %v321 = vld [vmem:[#allocation7 + $0xd8] sm:$0xff]
    %v322 = vld [vmem:[#allocation7 + $0xe0] sm:$0xff]
    %v323 = vld [vmem:[#allocation7 + $0xe8] sm:$0xff]
    %v324 = vld [vmem:[#allocation7 + $0xf0] sm:$0xff]
    %v325 = vld [vmem:[#allocation7 + $0xf8] sm:$0xff]
    %v326 = vld [vmem:[#allocation7 + $0x100] sm:$0xff]
    %v327 = vld [vmem:[#allocation7 + $0x108] sm:$0xff]
    %v328 = vld [vmem:[#allocation7 + $0x110] sm:$0xff]
    %v329 = vld [vmem:[#allocation7 + $0x118] sm:$0xff]
    %v330 = vld [vmem:[#allocation7 + $0x120] sm:$0xff]
    %v331 = vld [vmem:[#allocation7 + $0x128] sm:$0xff]
    %v332 = vld [vmem:[#allocation7 + $0x130] sm:$0xff]
    %v333 = vld [vmem:[#allocation7 + $0x138] sm:$0xff]
    %v334 = vld [vmem:[#allocation7 + $0x140] sm:$0xff]
    %v335 = vld [vmem:[#allocation7 + $0x148] sm:$0xff]
    %v336 = vld [vmem:[#allocation7 + $0x150] sm:$0xff]
    %v337 = vld [vmem:[#allocation7 + $0x158] sm:$0xff]
    %v338 = vld [vmem:[#allocation7 + $0x160] sm:$0xff]
    %v339 = vld [vmem:[#allocation7 + $0x168] sm:$0xff]
    %v340 = vld [vmem:[#allocation7 + $0x170] sm:$0xff]
    %v341 = vld [vmem:[#allocation7 + $0x178] sm:$0xff]
    %v342 = vld [vmem:[#allocation7 + $0x180] sm:$0xff]
    %v343 = vld [vmem:[#allocation7 + $0x188] sm:$0xff]
    %v344 = vld [vmem:[#allocation7 + $0x190] sm:$0xff]
    %v345 = vld [vmem:[#allocation7 + $0x198] sm:$0xff]
    %v346 = vld [vmem:[#allocation7 + $0x1a0] sm:$0xff]
    %v347 = vld [vmem:[#allocation7 + $0x1a8] sm:$0xff]
    %v348 = vld [vmem:[#allocation7 + $0x1b0] sm:$0xff]
    %v349 = vld [vmem:[#allocation7 + $0x1b8] sm:$0xff]
    %v350 = vld [vmem:[#allocation7 + $0x1c0] sm:$0xff]
    %v351 = vld [vmem:[#allocation7 + $0x1c8] sm:$0xff]
    %v352 = vld [vmem:[#allocation7 + $0x1d0] sm:$0xff]
    %v353 = vld [vmem:[#allocation7 + $0x1d8] sm:$0xff]
    %v354 = vld [vmem:[#allocation7 + $0x1e0] sm:$0xff]
    %v355 = vld [vmem:[#allocation7 + $0x1e8] sm:$0xff]
    %v356 = vld [vmem:[#allocation7 + $0x1f0] sm:$0xff]
    %v357 = vld [vmem:[#allocation7 + $0x1f8] sm:$0xff]
    %v358 = vld [vmem:[%s4] sm:$0x3]
    %v360 = vlaneseq
    %v361 = vshrl.u32 %v360, 7
    %v362 = vsub.s32 0, %v361
    %v363 = vrot.slane %v358, %v362
    %v364 = vlaneseq
    %v365 = vshrl.u32 %v364, 7
    %v366 = vsub.s32 1, %v365
    %v367 = vrot.slane %v358, %v366
    %v434 = vunpack.c.l.b16 %v294
    %v435 = vunpack.c.h.b16 %v294
    %v436 = vunpack.c.l.b16 %v295
    %v437 = vunpack.c.h.b16 %v295
    %v438 = vunpack.c.l.b16 %v296
    %v439 = vunpack.c.h.b16 %v296
    %v440 = vunpack.c.l.b16 %v297
    %v441 = vunpack.c.h.b16 %v297
    %v442 = vunpack.c.l.b16 %v298
    %v443 = vunpack.c.h.b16 %v298
    %v444 = vunpack.c.l.b16 %v299
    %v445 = vunpack.c.h.b16 %v299
    %v446 = vunpack.c.l.b16 %v300
    %v447 = vunpack.c.h.b16 %v300
    %v448 = vunpack.c.l.b16 %v301
    %v449 = vunpack.c.h.b16 %v301
    %v450 = vunpack.c.l.b16 %v302
    %v451 = vunpack.c.h.b16 %v302
    %v452 = vunpack.c.l.b16 %v303
    %v453 = vunpack.c.h.b16 %v303
    %v454 = vunpack.c.l.b16 %v304
    %v455 = vunpack.c.h.b16 %v304
    %v456 = vunpack.c.l.b16 %v305
    %v457 = vunpack.c.h.b16 %v305
    %v458 = vunpack.c.l.b16 %v306
    %v459 = vunpack.c.h.b16 %v306
    %v460 = vunpack.c.l.b16 %v307
    %v461 = vunpack.c.h.b16 %v307
    %v462 = vunpack.c.l.b16 %v308
    %v463 = vunpack.c.h.b16 %v308
    %v464 = vunpack.c.l.b16 %v309
    %v465 = vunpack.c.h.b16 %v309
    %v466 = vunpack.c.l.b16 %v310
    %v467 = vunpack.c.h.b16 %v310
    %v468 = vunpack.c.l.b16 %v311
    %v469 = vunpack.c.h.b16 %v311
    %v470 = vunpack.c.l.b16 %v312
    %v471 = vunpack.c.h.b16 %v312
    %v472 = vunpack.c.l.b16 %v313
    %v473 = vunpack.c.h.b16 %v313
    %v474 = vunpack.c.l.b16 %v314
    %v475 = vunpack.c.h.b16 %v314
    %v476 = vunpack.c.l.b16 %v315
    %v477 = vunpack.c.h.b16 %v315
    %v478 = vunpack.c.l.b16 %v316
    %v479 = vunpack.c.h.b16 %v316
    %v480 = vunpack.c.l.b16 %v317
    %v481 = vunpack.c.h.b16 %v317
    %v482 = vunpack.c.l.b16 %v318
    %v483 = vunpack.c.h.b16 %v318
    %v484 = vunpack.c.l.b16 %v319
    %v485 = vunpack.c.h.b16 %v319
    %v486 = vunpack.c.l.b16 %v320
    %v487 = vunpack.c.h.b16 %v320
    %v488 = vunpack.c.l.b16 %v321
    %v489 = vunpack.c.h.b16 %v321
    %v490 = vunpack.c.l.b16 %v322
    %v491 = vunpack.c.h.b16 %v322
    %v492 = vunpack.c.l.b16 %v323
    %v493 = vunpack.c.h.b16 %v323
    %v494 = vunpack.c.l.b16 %v324
    %v495 = vunpack.c.h.b16 %v324
    %v496 = vunpack.c.l.b16 %v325
    %v497 = vunpack.c.h.b16 %v325
    %v498 = vunpack.c.l.b16 %v326
    %v499 = vunpack.c.h.b16 %v326
    %v500 = vunpack.c.l.b16 %v327
    %v501 = vunpack.c.h.b16 %v327
    %v502 = vunpack.c.l.b16 %v328
    %v503 = vunpack.c.h.b16 %v328
    %v504 = vunpack.c.l.b16 %v329
    %v505 = vunpack.c.h.b16 %v329
    %v506 = vunpack.c.l.b16 %v330
    %v507 = vunpack.c.h.b16 %v330
    %v508 = vunpack.c.l.b16 %v331
    %v509 = vunpack.c.h.b16 %v331
    %v510 = vunpack.c.l.b16 %v332
    %v511 = vunpack.c.h.b16 %v332
    %v512 = vunpack.c.l.b16 %v333
    %v513 = vunpack.c.h.b16 %v333
    %v514 = vunpack.c.l.b16 %v334
    %v515 = vunpack.c.h.b16 %v334
    %v516 = vunpack.c.l.b16 %v335
    %v517 = vunpack.c.h.b16 %v335
    %v518 = vunpack.c.l.b16 %v336
    %v519 = vunpack.c.h.b16 %v336
    %v520 = vunpack.c.l.b16 %v337
    %v521 = vunpack.c.h.b16 %v337
    %v522 = vunpack.c.l.b16 %v338
    %v523 = vunpack.c.h.b16 %v338
    %v524 = vunpack.c.l.b16 %v339
    %v525 = vunpack.c.h.b16 %v339
    %v526 = vunpack.c.l.b16 %v340
    %v527 = vunpack.c.h.b16 %v340
    %v528 = vunpack.c.l.b16 %v341
    %v529 = vunpack.c.h.b16 %v341
    %v530 = vunpack.c.l.b16 %v342
    %v531 = vunpack.c.h.b16 %v342
    %v532 = vunpack.c.l.b16 %v343
    %v533 = vunpack.c.h.b16 %v343
    %v534 = vunpack.c.l.b16 %v344
    %v535 = vunpack.c.h.b16 %v344
    %v536 = vunpack.c.l.b16 %v345
    %v537 = vunpack.c.h.b16 %v345
    %v538 = vunpack.c.l.b16 %v346
    %v539 = vunpack.c.h.b16 %v346
    %v540 = vunpack.c.l.b16 %v347
    %v541 = vunpack.c.h.b16 %v347
    %v542 = vunpack.c.l.b16 %v348
    %v543 = vunpack.c.h.b16 %v348
    %v544 = vunpack.c.l.b16 %v349
    %v545 = vunpack.c.h.b16 %v349
    %v546 = vunpack.c.l.b16 %v350
    %v547 = vunpack.c.h.b16 %v350
    %v548 = vunpack.c.l.b16 %v351
    %v549 = vunpack.c.h.b16 %v351
    %v550 = vunpack.c.l.b16 %v352
    %v551 = vunpack.c.h.b16 %v352
    %v552 = vunpack.c.l.b16 %v353
    %v553 = vunpack.c.h.b16 %v353
    %v554 = vunpack.c.l.b16 %v354
    %v555 = vunpack.c.h.b16 %v354
    %v556 = vunpack.c.l.b16 %v355
    %v557 = vunpack.c.h.b16 %v355
    %v558 = vunpack.c.l.b16 %v356
    %v559 = vunpack.c.h.b16 %v356
    %v560 = vunpack.c.l.b16 %v357
    %v561 = vunpack.c.h.b16 %v357
    %v562 = vpack.c.b16 %v436, %v434
    %v563 = vpack.c.b16 %v437, %v435
    %v564 = vpack.c.b16 %v440, %v438
    %v565 = vpack.c.b16 %v441, %v439
    %v566 = vpack.c.b16 %v444, %v442
    %v567 = vpack.c.b16 %v445, %v443
    %v568 = vpack.c.b16 %v448, %v446
    %v569 = vpack.c.b16 %v449, %v447
    %v570 = vpack.c.b16 %v452, %v450
    %v571 = vpack.c.b16 %v453, %v451
    %v572 = vpack.c.b16 %v456, %v454
    %v573 = vpack.c.b16 %v457, %v455
    %v574 = vpack.c.b16 %v460, %v458
    %v575 = vpack.c.b16 %v461, %v459
    %v576 = vpack.c.b16 %v464, %v462
    %v577 = vpack.c.b16 %v465, %v463
    %v578 = vpack.c.b16 %v468, %v466
    %v579 = vpack.c.b16 %v469, %v467
    %v580 = vpack.c.b16 %v472, %v470
    %v581 = vpack.c.b16 %v473, %v471
    %v582 = vpack.c.b16 %v476, %v474
    %v583 = vpack.c.b16 %v477, %v475
    %v584 = vpack.c.b16 %v480, %v478
    %v585 = vpack.c.b16 %v481, %v479
    %v586 = vpack.c.b16 %v484, %v482
    %v587 = vpack.c.b16 %v485, %v483
    %v588 = vpack.c.b16 %v488, %v486
    %v589 = vpack.c.b16 %v489, %v487
    %v590 = vpack.c.b16 %v492, %v490
    %v591 = vpack.c.b16 %v493, %v491
    %v592 = vpack.c.b16 %v496, %v494
    %v593 = vpack.c.b16 %v497, %v495
    %v594 = vpack.c.b16 %v500, %v498
    %v595 = vpack.c.b16 %v501, %v499
    %v596 = vpack.c.b16 %v504, %v502
    %v597 = vpack.c.b16 %v505, %v503
    %v598 = vpack.c.b16 %v508, %v506
    %v599 = vpack.c.b16 %v509, %v507
    %v600 = vpack.c.b16 %v512, %v510
    %v601 = vpack.c.b16 %v513, %v511
    %v602 = vpack.c.b16 %v516, %v514
    %v603 = vpack.c.b16 %v517, %v515
    %v604 = vpack.c.b16 %v520, %v518
    %v605 = vpack.c.b16 %v521, %v519
    %v606 = vpack.c.b16 %v524, %v522
    %v607 = vpack.c.b16 %v525, %v523
    %v608 = vpack.c.b16 %v528, %v526
    %v609 = vpack.c.b16 %v529, %v527
    %v610 = vpack.c.b16 %v532, %v530
    %v611 = vpack.c.b16 %v533, %v531
    %v612 = vpack.c.b16 %v536, %v534
    %v613 = vpack.c.b16 %v537, %v535
    %v614 = vpack.c.b16 %v540, %v538
    %v615 = vpack.c.b16 %v541, %v539
    %v616 = vpack.c.b16 %v544, %v542
    %v617 = vpack.c.b16 %v545, %v543
    %v618 = vpack.c.b16 %v548, %v546
    %v619 = vpack.c.b16 %v549, %v547
    %v620 = vpack.c.b16 %v552, %v550
    %v621 = vpack.c.b16 %v553, %v551
    %v622 = vpack.c.b16 %v556, %v554
    %v623 = vpack.c.b16 %v557, %v555
    %v624 = vpack.c.b16 %v560, %v558
    %v625 = vpack.c.b16 %v561, %v559
    %690 = vmatprep.subr.bf16.mxu0 %v563
    %691 = vmatpush1.bf16.msra.mxu0 %v562
    %692 = vmatprep.subr.bf16.mxu0 %v565
    %693 = vmatpush1.bf16.msra.mxu0 %v564
    %694 = vmatprep.subr.bf16.mxu0 %v567
    %695 = vmatpush1.bf16.msra.mxu0 %v566
    %696 = vmatprep.subr.bf16.mxu0 %v569
    %697 = vmatpush1.bf16.msra.mxu0 %v568
    %698 = vmatprep.subr.bf16.mxu0 %v571
    %699 = vmatpush1.bf16.msra.mxu0 %v570
    %700 = vmatprep.subr.bf16.mxu0 %v573
    %701 = vmatpush1.bf16.msra.mxu0 %v572
    %702 = vmatprep.subr.bf16.mxu0 %v575
    %703 = vmatpush1.bf16.msra.mxu0 %v574
    %704 = vmatprep.subr.bf16.mxu0 %v577
    %705 = vmatpush1.bf16.msra.mxu0 %v576
    %706 = vmatprep.subr.bf16.mxu0 %v579
    %707 = vmatpush1.bf16.msra.mxu0 %v578
    %708 = vmatprep.subr.bf16.mxu0 %v581
    %709 = vmatpush1.bf16.msra.mxu0 %v580
    %710 = vmatprep.subr.bf16.mxu0 %v583
    %711 = vmatpush1.bf16.msra.mxu0 %v582
    %712 = vmatprep.subr.bf16.mxu0 %v585
    %713 = vmatpush1.bf16.msra.mxu0 %v584
    %714 = vmatprep.subr.bf16.mxu0 %v587
    %715 = vmatpush1.bf16.msra.mxu0 %v586
    %716 = vmatprep.subr.bf16.mxu0 %v589
    %717 = vmatpush1.bf16.msra.mxu0 %v588
    %718 = vmatprep.subr.bf16.mxu0 %v591
    %719 = vmatpush1.bf16.msra.mxu0 %v590
    %720 = vmatprep.subr.bf16.mxu0 %v593
    %721 = vmatpush1.bf16.msra.mxu0 %v592
    %722 = vmatprep.mubr.bf16.mxu0 %v291
    %723 = vmatmul.mubr.bf16.gmra.mrb[0].mxu0 %v290
    %v724 = vpop.f32.mrb[0].mxu0
    %v725 = vadd.f32 %v363, %v724
    %v726 = vpop.f32.mrb[0].mxu0
    %v727 = vadd.f32 %v367, %v726
    %v728 = vpop.f32.mrb[0].mxu0
    %v729 = vpop.f32.mrb[0].mxu0
    %730 = vdwg.mxu0
    %731 = vmatprep.subr.bf16.mxu0 %v595
    %732 = vmatpush1.bf16.msra.mxu0 %v594
    %733 = vmatprep.subr.bf16.mxu0 %v597
    %734 = vmatpush1.bf16.msra.mxu0 %v596
    %735 = vmatprep.subr.bf16.mxu0 %v599
    %736 = vmatpush1.bf16.msra.mxu0 %v598
    %737 = vmatprep.subr.bf16.mxu0 %v601
    %738 = vmatpush1.bf16.msra.mxu0 %v600
    %739 = vmatprep.subr.bf16.mxu0 %v603
    %740 = vmatpush1.bf16.msra.mxu0 %v602
    %741 = vmatprep.subr.bf16.mxu0 %v605
    %742 = vmatpush1.bf16.msra.mxu0 %v604
    %743 = vmatprep.subr.bf16.mxu0 %v607
    %744 = vmatpush1.bf16.msra.mxu0 %v606
    %745 = vmatprep.subr.bf16.mxu0 %v609
    %746 = vmatpush1.bf16.msra.mxu0 %v608
    %747 = vmatprep.subr.bf16.mxu0 %v611
    %748 = vmatpush1.bf16.msra.mxu0 %v610
    %749 = vmatprep.subr.bf16.mxu0 %v613
    %750 = vmatpush1.bf16.msra.mxu0 %v612
    %751 = vmatprep.subr.bf16.mxu0 %v615
    %752 = vmatpush1.bf16.msra.mxu0 %v614
    %753 = vmatprep.subr.bf16.mxu0 %v617
    %754 = vmatpush1.bf16.msra.mxu0 %v616
    %755 = vmatprep.subr.bf16.mxu0 %v619
    %756 = vmatpush1.bf16.msra.mxu0 %v618
    %757 = vmatprep.subr.bf16.mxu0 %v621
    %758 = vmatpush1.bf16.msra.mxu0 %v620
    %759 = vmatprep.subr.bf16.mxu0 %v623
    %760 = vmatpush1.bf16.msra.mxu0 %v622
    %761 = vmatprep.subr.bf16.mxu0 %v625
    %762 = vmatpush1.bf16.msra.mxu0 %v624
    %763 = vmatprep.mubr.bf16.mxu0 %v293
    %764 = vmatmul.mubr.bf16.gmra.mrb[0].mxu0 %v292
    %v765 = vpop.f32.mrb[0].mxu0
    %v766 = vadd.f32 %v725, %v765
    %v767 = vpop.f32.mrb[0].mxu0
    %v768 = vadd.f32 %v727, %v767
    %v769 = vpop.f32.mrb[0].mxu0
    %v770 = vpop.f32.mrb[0].mxu0
    %771 = vdwg.mxu0
    %v772 = vmax.f32 %v766, 0.0
    %v773 = vmax.f32 %v768, 0.0
    %v774 = vpack.c.bf16 %v772, %v772
    %v775 = vpack.c.bf16 %v773, %v773
    %v776 = vld [vmem:[#allocation8] sm:$0xf]
    %v777 = vld [vmem:[#allocation8 + $0x4] sm:$0xf]
    %v778 = vld [vmem:[#allocation8 + $0x8] sm:$0xf]
    %v779 = vld [vmem:[#allocation8 + $0xc] sm:$0xf]
    %v780 = vld [vmem:[#allocation8 + $0x10] sm:$0xf]
    %v781 = vld [vmem:[#allocation8 + $0x14] sm:$0xf]
    %v782 = vld [vmem:[#allocation8 + $0x18] sm:$0xf]
    %v783 = vld [vmem:[#allocation8 + $0x1c] sm:$0xf]
    %v784 = vld [vmem:[#allocation8 + $0x20] sm:$0xf]
    %v785 = vld [vmem:[#allocation8 + $0x24] sm:$0xf]
    %v786 = vld [vmem:[#allocation8 + $0x28] sm:$0xf]
    %v787 = vld [vmem:[#allocation8 + $0x2c] sm:$0xf]
    %v788 = vld [vmem:[#allocation8 + $0x30] sm:$0xf]
    %v789 = vld [vmem:[#allocation8 + $0x34] sm:$0xf]
    %v790 = vld [vmem:[#allocation8 + $0x38] sm:$0xf]
    %v791 = vld [vmem:[#allocation8 + $0x3c] sm:$0xf]
    %v792 = vld [vmem:[#allocation8 + $0x40] sm:$0xf]
    %v793 = vld [vmem:[#allocation8 + $0x44] sm:$0xf]
    %v794 = vld [vmem:[#allocation8 + $0x48] sm:$0xf]
    %v795 = vld [vmem:[#allocation8 + $0x4c] sm:$0xf]
    %v796 = vld [vmem:[#allocation8 + $0x50] sm:$0xf]
    %v797 = vld [vmem:[#allocation8 + $0x54] sm:$0xf]
    %v798 = vld [vmem:[#allocation8 + $0x58] sm:$0xf]
    %v799 = vld [vmem:[#allocation8 + $0x5c] sm:$0xf]
    %v800 = vld [vmem:[#allocation8 + $0x60] sm:$0xf]
    %v801 = vld [vmem:[#allocation8 + $0x64] sm:$0xf]
    %v802 = vld [vmem:[#allocation8 + $0x68] sm:$0xf]
    %v803 = vld [vmem:[#allocation8 + $0x6c] sm:$0xf]
    %v804 = vld [vmem:[#allocation8 + $0x70] sm:$0xf]
    %v805 = vld [vmem:[#allocation8 + $0x74] sm:$0xf]
    %v806 = vld [vmem:[#allocation8 + $0x78] sm:$0xf]
    %v807 = vld [vmem:[#allocation8 + $0x7c] sm:$0xf]
    %v808 = vld [vmem:[%s6] sm:$0x1]
    %v810 = vlaneseq
    %v811 = vshrl.u32 %v810, 7
    %v812 = vsub.s32 0, %v811
    %v813 = vrot.slane %v808, %v812
    %v847 = vunpack.c.l.b16 %v776
    %v848 = vunpack.c.l.b16 %v777
    %v849 = vunpack.c.l.b16 %v778
    %v850 = vunpack.c.l.b16 %v779
    %v851 = vunpack.c.l.b16 %v780
    %v852 = vunpack.c.l.b16 %v781
    %v853 = vunpack.c.l.b16 %v782
    %v854 = vunpack.c.l.b16 %v783
    %v855 = vunpack.c.l.b16 %v784
    %v856 = vunpack.c.l.b16 %v785
    %v857 = vunpack.c.l.b16 %v786
    %v858 = vunpack.c.l.b16 %v787
    %v859 = vunpack.c.l.b16 %v788
    %v860 = vunpack.c.l.b16 %v789
    %v861 = vunpack.c.l.b16 %v790
    %v862 = vunpack.c.l.b16 %v791
    %v863 = vunpack.c.l.b16 %v792
    %v864 = vunpack.c.l.b16 %v793
    %v865 = vunpack.c.l.b16 %v794
    %v866 = vunpack.c.l.b16 %v795
    %v867 = vunpack.c.l.b16 %v796
    %v868 = vunpack.c.l.b16 %v797
    %v869 = vunpack.c.l.b16 %v798
    %v870 = vunpack.c.l.b16 %v799
    %v871 = vunpack.c.l.b16 %v800
    %v872 = vunpack.c.l.b16 %v801
    %v873 = vunpack.c.l.b16 %v802
    %v874 = vunpack.c.l.b16 %v803
    %v875 = vunpack.c.l.b16 %v804
    %v876 = vunpack.c.l.b16 %v805
    %v877 = vunpack.c.l.b16 %v806
    %v878 = vunpack.c.l.b16 %v807
    %v879 = vpack.c.b16 %v848, %v847
    %v880 = vpack.c.b16 %v850, %v849
    %v881 = vpack.c.b16 %v852, %v851
    %v882 = vpack.c.b16 %v854, %v853
    %v883 = vpack.c.b16 %v856, %v855
    %v884 = vpack.c.b16 %v858, %v857
    %v885 = vpack.c.b16 %v860, %v859
    %v886 = vpack.c.b16 %v862, %v861
    %v887 = vpack.c.b16 %v864, %v863
    %v888 = vpack.c.b16 %v866, %v865
    %v889 = vpack.c.b16 %v868, %v867
    %v890 = vpack.c.b16 %v870, %v869
    %v891 = vpack.c.b16 %v872, %v871
    %v892 = vpack.c.b16 %v874, %v873
    %v893 = vpack.c.b16 %v876, %v875
    %v894 = vpack.c.b16 %v878, %v877
    %911 = vmatprep.subr.bf16.mxu0 0
    %912 = vmatpush1.bf16.msra.mxu0 %v879
    %913 = vmatprep.subr.bf16.mxu0 0
    %914 = vmatpush1.bf16.msra.mxu0 %v880
    %915 = vmatprep.subr.bf16.mxu0 0
    %916 = vmatpush1.bf16.msra.mxu0 %v881
    %917 = vmatprep.subr.bf16.mxu0 0
    %918 = vmatpush1.bf16.msra.mxu0 %v882
    %919 = vmatprep.subr.bf16.mxu0 0
    %920 = vmatpush1.bf16.msra.mxu0 %v883
    %921 = vmatprep.subr.bf16.mxu0 0
    %922 = vmatpush1.bf16.msra.mxu0 %v884
    %923 = vmatprep.subr.bf16.mxu0 0
    %924 = vmatpush1.bf16.msra.mxu0 %v885
    %925 = vmatprep.subr.bf16.mxu0 0
    %926 = vmatpush1.bf16.msra.mxu0 %v886
    %927 = vmatprep.subr.bf16.mxu0 0
    %928 = vmatpush1.bf16.msra.mxu0 %v887
    %929 = vmatprep.subr.bf16.mxu0 0
    %930 = vmatpush1.bf16.msra.mxu0 %v888
    %931 = vmatprep.subr.bf16.mxu0 0
    %932 = vmatpush1.bf16.msra.mxu0 %v889
    %933 = vmatprep.subr.bf16.mxu0 0
    %934 = vmatpush1.bf16.msra.mxu0 %v890
    %935 = vmatprep.subr.bf16.mxu0 0
    %936 = vmatpush1.bf16.msra.mxu0 %v891
    %937 = vmatprep.subr.bf16.mxu0 0
    %938 = vmatpush1.bf16.msra.mxu0 %v892
    %939 = vmatprep.subr.bf16.mxu0 0
    %940 = vmatpush1.bf16.msra.mxu0 %v893
    %941 = vmatprep.subr.bf16.mxu0 0
    %942 = vmatpush1.bf16.msra.mxu0 %v894
    %943 = vmatprep.mubr.bf16.mxu0 %v775
    %944 = vmatmul.mubr.bf16.gmra.mrb[0].mxu0 %v774
    %v945 = vpop.f32.mrb[0].mxu0
    %v946 = vadd.f32 %v813, %v945
    %v947 = vpop.f32.mrb[0].mxu0
    %v948 = vpop.f32.mrb[0].mxu0
    %v949 = vpop.f32.mrb[0].mxu0
    %950 = vdwg.mxu0
    %951 = vst [vmem:[#allocation10] sm:$0xff] %v946
    // Predicated region
    $region46: #{tpu_custom_call.1} parent=1 // pred_check
      _
    $region47: #{tpu_custom_call.1} parent=1 // pred_check_branch
      %953 = sbr.rel (0) target = $region49
    $region48: #{tpu_custom_call.1} parent=1 // pred_region
      %s955 = ssub.s32 128, 128
      %956 = vsyncadd [#allocation4], %s955
      %s958 = sshll.u32 [#allocation10], 4
      %s959 = int_to_ptr.vmem [resolvable:$true] %s958
      %961 = dma.vmem_to_hbm [thread:$0]  %s959, 128, %s7, [#allocation4]
    $region49: #{tpu_custom_call.1} parent=1 // pred_fallthru
      _
    // Predicated region
    $region50: #{tpu_custom_call.1} parent=1 // pred_check
      _
    $region51: #{tpu_custom_call.1} parent=1 // pred_check_branch
      %963 = sbr.rel (0) target = $region53
    $region52: #{tpu_custom_call.1} parent=1 // pred_region
      %964 = dma.done [#allocation4], 128
    $region53: #{tpu_custom_call.1} parent=1 // pred_fallthru
      _
    %965 = vsyncpa [#allocation3], 1
    %966 = vsyncpa [#allocation6], 1
    %967 = vsyncpa [#allocation9], 1
    %968 = vsyncpa [#allocation4], 1

</llo_original>
